<compile_context>
chip_gen: v5e
topology: v5e:2x2
jax: 0.10.0
libtpu: 0.0.40
codegen_flags: <defaults>
</compile_context>

<pallas_src>
import jax
import jax.numpy as jnp
from jax.experimental import pallas as pl
from jax.experimental.pallas import tpu as pltpu


def _make_kernel(hw, tile, needs_mask):
    """Builds the kernel with static spatial extent / tile size baked in."""
    inv_hw = 1.0 / float(hw)

    def kernel(x_ref, w1t_ref, w2t_ref, out_ref, sum_ref, max_ref):
        # x_ref:   (1, C, tile)   current batch row, current spatial tile
        # w1t_ref: (C, C_mid)     first 1x1 conv weight, pre-transposed
        # w2t_ref: (C_mid, C)     second 1x1 conv weight, pre-transposed
        # out_ref: (1, 1, C)      sigmoid channel-attention weights (this batch)
        # sum_ref: (1, C) f32     running spatial sum
        # max_ref: (1, C) f32     running spatial max
        s = pl.program_id(1)
        n_s = pl.num_programs(1)

        @pl.when(s == 0)
        def _():
            sum_ref[...] = jnp.zeros_like(sum_ref)
            max_ref[...] = jnp.full_like(max_ref, -jnp.inf)

        x = x_ref[...].astype(jnp.float32)                  # (1, C, tile)

        if needs_mask:
            # Mask lanes past the true spatial extent of the last partial tile.
            col = jax.lax.broadcasted_iota(jnp.int32, x.shape, 2) + s * tile
            valid = col < hw
            x_sum = jnp.where(valid, x, 0.0)
            x_max = jnp.where(valid, x, -jnp.inf)
        else:
            x_sum = x
            x_max = x

        sum_ref[...] += jnp.sum(x_sum, axis=-1)             # (1, C)
        max_ref[...] = jnp.maximum(max_ref[...], jnp.max(x_max, axis=-1))

        @pl.when(s == n_s - 1)
        def _():
            avg = sum_ref[...] * inv_hw                     # (1, C) mean pool
            mx = max_ref[...]                               # (1, C) max pool
            # Fused fc: run the shared MLP once on both pooled vectors.
            pooled = jnp.concatenate([avg, mx], axis=0)     # (2, C)
            w1t = w1t_ref[...].astype(jnp.float32)          # (C, C_mid)
            w2t = w2t_ref[...].astype(jnp.float32)          # (C_mid, C)
            h = jnp.maximum(
                jnp.dot(pooled, w1t, preferred_element_type=jnp.float32), 0.0)
            y = jnp.dot(h, w2t, preferred_element_type=jnp.float32)   # (2, C)
            att = jax.nn.sigmoid(y[0:1, :] + y[1:2, :])     # (1, C)
            out_ref[...] = att.reshape(out_ref.shape).astype(out_ref.dtype)

    return kernel


def channel_attention(x, w1, w2, *, t_hw=512):
    """x:  (B, C, H, W) NCHW.
    w1: (C_mid, C, 1, 1)  -- Conv2d(C, C // ratio, 1, bias=False).weight
    w2: (C, C, 1, 1)      -- Conv2d(C, C, 1, bias=False).weight
    Returns (B, C, 1, 1), matching the PyTorch module."""
    B, C, H, W = x.shape
    c_mid = w1.shape[0]
    hw = H * W

    x_flat = x.reshape(B, C, hw)
    w1t = w1.reshape(c_mid, C).T                            # (C, C_mid)
    w2t = w2.reshape(w2.shape[0], w2.shape[1]).T            # (C_mid_expected, C)

    # Spatial tile: either the whole extent (always legal) or a multiple of 128.
    if hw <= t_hw:
        tile = hw
    else:
        tile = max(128, (t_hw // 128) * 128)
    n_s = pl.cdiv(hw, tile)
    needs_mask = (hw % tile) != 0

    kernel = _make_kernel(hw=hw, tile=tile, needs_mask=needs_mask)

    grid_spec = pltpu.PrefetchScalarGridSpec(
        num_scalar_prefetch=0,
        grid=(B, n_s),
        in_specs=[
            # Activation: one batch row, one spatial tile per grid step.
            pl.BlockSpec((1, C, tile), lambda b, s: (b, 0, s)),
            # Weights: constant block index -> DMA'd into VMEM only once.
            pl.BlockSpec((C, c_mid), lambda b, s: (0, 0)),
            pl.BlockSpec((c_mid, C), lambda b, s: (0, 0)),
        ],
        out_specs=pl.BlockSpec((1, 1, C), lambda b, s: (b, 0, 0)),
        scratch_shapes=[
            pltpu.VMEM((1, C), jnp.float32),   # running sum
            pltpu.VMEM((1, C), jnp.float32),   # running max
        ],
    )

    # Memory-dominated custom call: tell XLA so it can overlap surrounding HLO.
    flops = 2 * B * C * hw + 8 * B * C * c_mid
    bytes_accessed = 4 * (B * C * hw + 2 * C * c_mid + B * C)
    cost = pl.CostEstimate(flops=flops,
                           transcendentals=B * C,
                           bytes_accessed=bytes_accessed)

    out = pl.pallas_call(
        kernel,
        out_shape=jax.ShapeDtypeStruct((B, 1, C), x.dtype),
        grid_spec=grid_spec,
        compiler_params=pltpu.CompilerParams(
            dimension_semantics=("parallel", "arbitrary")),
        cost_estimate=cost,
    )(x_flat, w1t, w2t)

    return out.reshape(B, C, 1, 1)


def reference_channel_attention(x, w1, w2):
    """Pure-JAX reference for correctness checking."""
    B, C, H, W = x.shape
    c_mid = w1.shape[0]
    avg = jnp.mean(x, axis=(2, 3))                          # (B, C)
    mx = jnp.max(x, axis=(2, 3))                            # (B, C)
    w1m = w1.reshape(c_mid, C)
    w2m = w2.reshape(w2.shape[0], w2.shape[1])

    def fc(v):
        h = jnp.maximum(v @ w1m.T, 0.0)
        return h @ w2m.T

    return jax.nn.sigmoid(fc(avg) + fc(mx)).reshape(B, C, 1, 1)


if __name__ == "__main__":
    B, C = 2, 64
    ratio = 1          # see NOTE: the reference module's fc only runs for ratio == 1
    c_mid = C // ratio

    key = jax.random.PRNGKey(0)
    kx, k1, k2, kx2 = jax.random.split(key, 4)

    # Deterministic "kaiming-ish" init for the 1x1 conv weights.
    w1 = jax.random.normal(k1, (c_mid, C, 1, 1), dtype=jnp.float32) * (2.0 / C) ** 0.5
    w2 = jax.random.normal(k2, (C, C, 1, 1), dtype=jnp.float32) * (2.0 / C) ** 0.5

    # Case 1: whole spatial extent fits a single tile (hw=256 <= 512).
    x1 = jax.random.normal(kx, (B, C, 16, 16), dtype=jnp.float32)
    out1 = jax.block_until_ready(channel_attention(x1, w1, w2))
    ref1 = reference_channel_attention(x1, w1, w2)
    assert out1.shape == (B, C, 1, 1), out1.shape
    assert jnp.allclose(out1, ref1, atol=1e-5, rtol=1e-5), "case 1 mismatch"

    # Case 2: multi-step spatial grid, no partial tile (hw=256, tile=128 -> 2 steps).
    out2 = jax.block_until_ready(channel_attention(x1, w1, w2, t_hw=128))
    assert jnp.allclose(out2, ref1, atol=1e-5, rtol=1e-5), "case 2 mismatch"

    # Case 3: partial last tile exercises the masking path (hw=320, tile=128 -> 3 steps).
    x3 = jax.random.normal(kx2, (B, C, 16, 20), dtype=jnp.float32)
    out3 = jax.block_until_ready(channel_attention(x3, w1, w2, t_hw=128))
    ref3 = reference_channel_attention(x3, w1, w2)
    assert jnp.allclose(out3, ref3, atol=1e-5, rtol=1e-5), "case 3 mismatch"

    print("KERNEL_OK")
</pallas_src>

<mosaic_0001>
module attributes {stable_mosaic.version = 11 : i64} {
  func.func @kernel(%arg0: i32, %arg1: i32, %arg2: memref<1x64x256xf32, #tpu.memory_space<vmem>>, %arg3: memref<64x64xf32, #tpu.memory_space<vmem>>, %arg4: memref<64x64xf32, #tpu.memory_space<vmem>>, %arg5: memref<1x1x64xf32, #tpu.memory_space<vmem>>, %arg6: memref<1x64xf32, #tpu.memory_space<vmem>>, %arg7: memref<1x64xf32, #tpu.memory_space<vmem>>) attributes {dimension_semantics = [#tpu.dimension_semantics<parallel>, #tpu.dimension_semantics<arbitrary>], iteration_bounds = array<i64: 2, 1>, scalar_prefetch = 0 : i64, scratch_operands = 2 : i64, tpu.core_type = #tpu.core_type<tc>, window_params = [{transform_indices = @transform_0, window_bounds = array<i64: 1, 64, 256>}, {pipeline_mode = #tpu.pipeline_mode<synchronous>, transform_indices = @transform_1, window_bounds = array<i64: 64, 64>}, {pipeline_mode = #tpu.pipeline_mode<synchronous>, transform_indices = @transform_2, window_bounds = array<i64: 64, 64>}, {transform_indices = @transform_3, window_bounds = array<i64: 1, 1, 64>}]} {
    %c0_i32 = arith.constant 0 : i32
    %0 = arith.cmpi eq, %arg1, %c0_i32 : i32
    %1 = arith.extui %0 : i1 to i32
    %c0_i32_0 = arith.constant 0 : i32
    %2 = arith.cmpi ne, %1, %c0_i32_0 : i32
    scf.if %2 {
      %cst_14 = arith.constant 0.000000e+00 : f32
      %15 = vector.broadcast %cst_14 : f32 to vector<1x64xf32>
      %c0_15 = arith.constant 0 : index
      %c0_16 = arith.constant 0 : index
      %16 = vector.load %arg6[%c0_15, %c0_16] : memref<1x64xf32, #tpu.memory_space<vmem>>, vector<1x64xf32>
      tpu.vector_store %arg6[%c0_15, %c0_16], %15 {strides = array<i32>} : memref<1x64xf32, #tpu.memory_space<vmem>>, vector<1x64xf32>,
      %cst_17 = arith.constant 0xFF800000 : f32
      %17 = vector.broadcast %cst_17 : f32 to vector<1x64xf32>
      %c0_18 = arith.constant 0 : index
      %c0_19 = arith.constant 0 : index
      %18 = vector.load %arg7[%c0_18, %c0_19] : memref<1x64xf32, #tpu.memory_space<vmem>>, vector<1x64xf32>
      tpu.vector_store %arg7[%c0_18, %c0_19], %17 {strides = array<i32>} : memref<1x64xf32, #tpu.memory_space<vmem>>, vector<1x64xf32>,
    } else {
    }
    %c0 = arith.constant 0 : index
    %c0_1 = arith.constant 0 : index
    %c0_2 = arith.constant 0 : index
    %3 = vector.load %arg2[%c0, %c0_1, %c0_2] : memref<1x64x256xf32, #tpu.memory_space<vmem>>, vector<1x64x256xf32>
    %c0_3 = arith.constant 0 : index
    %c0_4 = arith.constant 0 : index
    %4 = vector.load %arg6[%c0_3, %c0_4] : memref<1x64xf32, #tpu.memory_space<vmem>>, vector<1x64xf32>
    %cst = arith.constant dense<0.000000e+00> : vector<1x64xf32>
    %5 = vector.multi_reduction <add>, %3, %cst [2] : vector<1x64x256xf32> to vector<1x64xf32>
    %6 = arith.addf %4, %5 : vector<1x64xf32>
    %c0_5 = arith.constant 0 : index
    %c0_6 = arith.constant 0 : index
    %7 = vector.load %arg6[%c0_5, %c0_6] : memref<1x64xf32, #tpu.memory_space<vmem>>, vector<1x64xf32>
    tpu.vector_store %arg6[%c0_5, %c0_6], %6 {strides = array<i32>} : memref<1x64xf32, #tpu.memory_space<vmem>>, vector<1x64xf32>,
    %c0_7 = arith.constant 0 : index
    %c0_8 = arith.constant 0 : index
    %8 = vector.load %arg7[%c0_7, %c0_8] : memref<1x64xf32, #tpu.memory_space<vmem>>, vector<1x64xf32>
    %cst_9 = arith.constant dense<0xFF800000> : vector<1x64xf32>
    %9 = vector.multi_reduction <maximumf>, %3, %cst_9 [2] : vector<1x64x256xf32> to vector<1x64xf32>
    %10 = arith.maximumf %8, %9 : vector<1x64xf32>
    %c0_10 = arith.constant 0 : index
    %c0_11 = arith.constant 0 : index
    %11 = vector.load %arg7[%c0_10, %c0_11] : memref<1x64xf32, #tpu.memory_space<vmem>>, vector<1x64xf32>
    tpu.vector_store %arg7[%c0_10, %c0_11], %10 {strides = array<i32>} : memref<1x64xf32, #tpu.memory_space<vmem>>, vector<1x64xf32>,
    %c0_i32_12 = arith.constant 0 : i32
    %12 = arith.cmpi eq, %arg1, %c0_i32_12 : i32
    %13 = arith.extui %12 : i1 to i32
    %c0_i32_13 = arith.constant 0 : i32
    %14 = arith.cmpi ne, %13, %c0_i32_13 : i32
    scf.if %14 {
      %c0_14 = arith.constant 0 : index
      %c0_15 = arith.constant 0 : index
      %15 = vector.load %arg6[%c0_14, %c0_15] : memref<1x64xf32, #tpu.memory_space<vmem>>, vector<1x64xf32>
      %cst_16 = arith.constant 3.906250e-03 : f32
      %16 = vector.broadcast %cst_16 : f32 to vector<1x64xf32>
      %17 = arith.mulf %15, %16 : vector<1x64xf32>
      %c0_17 = arith.constant 0 : index
      %c0_18 = arith.constant 0 : index
      %18 = vector.load %arg7[%c0_17, %c0_18] : memref<1x64xf32, #tpu.memory_space<vmem>>, vector<1x64xf32>
      %19 = tpu.concatenate %17, %18 in 0 : vector<1x64xf32>, vector<1x64xf32> -> vector<2x64xf32>
      %c0_19 = arith.constant 0 : index
      %c0_20 = arith.constant 0 : index
      %20 = vector.load %arg3[%c0_19, %c0_20] : memref<64x64xf32, #tpu.memory_space<vmem>>, vector<64x64xf32>
      %c0_21 = arith.constant 0 : index
      %c0_22 = arith.constant 0 : index
      %21 = vector.load %arg4[%c0_21, %c0_22] : memref<64x64xf32, #tpu.memory_space<vmem>>, vector<64x64xf32>
      %cst_23 = arith.constant dense<0.000000e+00> : vector<2x64xf32>
      %22 = tpu.matmul %19, %20, %cst_23 {dimension_numbers = #tpu.dot_dimension_numbers<[1], [0], [0], [1], [0, 0, 1, 1], [], []>} : vector<2x64xf32>, vector<64x64xf32>, vector<2x64xf32> -> vector<2x64xf32>
      %cst_24 = arith.constant 0.000000e+00 : f32
      %23 = vector.broadcast %cst_24 : f32 to vector<2x64xf32>
      %24 = arith.maximumf %22, %23 : vector<2x64xf32>
      %cst_25 = arith.constant dense<0.000000e+00> : vector<2x64xf32>
      %25 = tpu.matmul %24, %21, %cst_25 {dimension_numbers = #tpu.dot_dimension_numbers<[1], [0], [0], [1], [0, 0, 1, 1], [], []>} : vector<2x64xf32>, vector<64x64xf32>, vector<2x64xf32> -> vector<2x64xf32>
      %26 = vector.extract_strided_slice %25 {offsets = [0, 0], sizes = [1, 64], strides = [1, 1]} : vector<2x64xf32> to vector<1x64xf32>
      %27 = vector.extract_strided_slice %25 {offsets = [1, 0], sizes = [1, 64], strides = [1, 1]} : vector<2x64xf32> to vector<1x64xf32>
      %28 = arith.addf %26, %27 : vector<1x64xf32>
      %29 = arith.negf %28 : vector<1x64xf32>
      %30 = math.exp %29 : vector<1x64xf32>
      %cst_26 = arith.constant 1.000000e+00 : f32
      %31 = vector.broadcast %cst_26 : f32 to vector<1x64xf32>
      %32 = arith.addf %31, %30 : vector<1x64xf32>
      %33 = arith.divf %31, %32 : vector<1x64xf32>
      %34 = vector.shape_cast %33 : vector<1x64xf32> to vector<1x1x64xf32>
      %c0_27 = arith.constant 0 : index
      %c0_28 = arith.constant 0 : index
      %c0_29 = arith.constant 0 : index
      %35 = vector.load %arg5[%c0_27, %c0_28, %c0_29] : memref<1x1x64xf32, #tpu.memory_space<vmem>>, vector<1x1x64xf32>
      tpu.vector_store %arg5[%c0_27, %c0_28, %c0_29], %34 {strides = array<i32>} : memref<1x1x64xf32, #tpu.memory_space<vmem>>, vector<1x1x64xf32>,
    } else {
    }
    return
  }
  func.func @transform_0(%arg0: i32, %arg1: i32) -> (i32, i32, i32) {
    %c0_i32 = arith.constant 0 : i32
    %c0_i32_0 = arith.constant 0 : i32
    return %arg0, %c0_i32, %arg1 : i32, i32, i32
  }
  func.func @transform_1(%arg0: i32, %arg1: i32) -> (i32, i32) {
    %c0_i32 = arith.constant 0 : i32
    %c0_i32_0 = arith.constant 0 : i32
    %c0_i32_1 = arith.constant 0 : i32
    return %c0_i32, %c0_i32_0 : i32, i32
  }
  func.func @transform_2(%arg0: i32, %arg1: i32) -> (i32, i32) {
    %c0_i32 = arith.constant 0 : i32
    %c0_i32_0 = arith.constant 0 : i32
    %c0_i32_1 = arith.constant 0 : i32
    return %c0_i32, %c0_i32_0 : i32, i32
  }
  func.func @transform_3(%arg0: i32, %arg1: i32) -> (i32, i32, i32) {
    %c0_i32 = arith.constant 0 : i32
    %c0_i32_0 = arith.constant 0 : i32
    %c0_i32_1 = arith.constant 0 : i32
    return %arg0, %c0_i32, %c0_i32_0 : i32, i32, i32
  }
}

</mosaic_0001>

<llo_original>
// kernel: tpu_custom_call.1
$region0: #{tpu_custom_call.1}
  #allocation0 [shape = 'u32[]', space=smem, size = 0x4, offset = 0x4, fixed_abs, tag = 'smem constant byte address 0x4 - core index']
  #allocation1 [shape = 'u32[72,128]{1,0:T(1,128)}', space=vmem, size = 0x9000, scoped, tag = 'internal scratch']
  #allocation2 [shape = 'f32[1,64]{1,0:T(1,128)}', space=vmem, size = 0x200, scoped, tag = 'scratch operand']
  #allocation3 [shape = 'f32[1,64]{1,0:T(1,128)}', space=vmem, size = 0x200, scoped, tag = 'scratch operand']
  %s0 = inlined_call_operand.hbm [shape: f32[2,64,256], index: 0, kind: input, shape index: {}]
  %s1 = inlined_call_operand.hbm [shape: f32[64,64], index: 1, kind: input, shape index: {}]
  %s2 = inlined_call_operand.hbm [shape: f32[64,64], index: 2, kind: input, shape index: {}]
  %s3 = inlined_call_operand.hbm [shape: f32[2,1,64], index: 3, kind: output, shape index: {}]
  %s4 = sld [smem:[#allocation0]]
  $region65: #{tpu_custom_call.1} parent=0
    _
  %s6 = ssub.s32 1, %s4
  %s7 = scalar_select 0, %s6, %s4
  $region1: #{tpu_custom_call.1} parent=0
    #allocation4 [shape = 'u8[131072]{0}', space=vmem, size = 0x20000, scoped, tag = 'input window, operand 0']
    #allocation5 [shape = 's32[2]{0}', space=sflag, size = 0x8, scoped, tag = 'scoped memory for tpu_custom_call.1']
    #allocation6 [shape = 's32[2]{0}', space=sflag, size = 0x8, scoped, tag = 'scoped memory for tpu_custom_call.1']
    #allocation7 [shape = 'u8[32768]{0}', space=vmem, size = 0x8000, scoped, tag = 'input window, operand 1, single buffered']
    #allocation8 [shape = 's32[1]{0}', space=sflag, size = 0x4, scoped, tag = 'scoped memory for tpu_custom_call.1']
    #allocation9 [shape = 'u8[32768]{0}', space=vmem, size = 0x8000, scoped, tag = 'input window, operand 2, single buffered']
    #allocation10 [shape = 'u8[1024]{0}', space=vmem, size = 0x400, scoped, tag = 'output window, operand 0']
    %8 = vsyncpa [#allocation5], 0
    %s9 = scalar_lea.sflag [#allocation5], 1
    %10 = vsyncpa %s9, 0
    %11 = vsyncpa [#allocation8], 0
    %12 = vsyncpa [#allocation6], 0
    %s13 = scalar_lea.sflag [#allocation6], 1
    %14 = vsyncpa %s13, 0
    loop: start=0, step=1, limit=4
    $region2: #{tpu_custom_call.1} parent=1 // loop_pre_header
      _
    $region3: #{tpu_custom_call.1} parent=1 // loop_header
      %s16 = sphi 0, %s20
      %p17 = scmp.ge.s32.totalorder %s16, 4
      %s23 = sphi 0, %s35
      %s24 = sphi 0, %s31
      %s25 = sphi 0, %s23
      %s26 = sphi 0, %s24
      %s27 = sphi 0, %s25
      %s28 = sphi 0, %s26
      %s40 = sphi 0, %s42
      %s43 = sphi 0, %s40
      %s44 = sphi 0, %s43
      %s60 = sphi 0, %s44
      %s64 = sphi 0, %s64
      %s66 = sphi 0, %s64
      %s67 = sphi 0, %s66
      %s81 = sphi 0, %s67
      %s85 = sphi 0, %s85
      %s87 = sphi 0, %s85
      %s88 = sphi 0, %s87
      %s102 = sphi 0, %s88
      %s108 = sphi 0, %s110
      %s111 = sphi 0, %s108
      %s112 = sphi 0, %s111
      %s128 = sphi 0, %s112
    $region4: #{tpu_custom_call.1} parent=1 // loop_header_branch
      %19 = sbr.rel (%p17) target = $region8
    $region5: #{tpu_custom_call.1} parent=1 // loop_body
      %s21 = ssub.s32 %s16, 1
      %s22 = ssub.s32 %s16, 2
      %s29 = sadd.s32 1, %s24
      %p30 = scmp.ge.s32.totalorder %s29, 1
      %s31 = scalar_select %p30, 0, %s29
      %s32 = sadd.s32 1, %s23
      %s33 = scalar_select %p30, %s32, %s23
      %p34 = scmp.ge.s32.totalorder %s33, 2
      %s35 = scalar_select %p34, 0, %s33
      %s36 = ssub.s32 %s23, %s35
      %s37 = ssub.s32 %s24, %s31
      %s38 = sor.u32 %s36, %s37
      %p39 = scmp.eq.s32.totalorder %s38, 0
      %s41 = sadd.s32 %s40, 1
      %s42 = scalar_select %p39, %s40, %s41
      %p45 = pneg %p39
      %p46 = scmp.eq.s32.totalorder %s16, 1
      %p47 = por %p45, %p46
      %p48 = scmp.ne.s32.totalorder %s40, %s43
      %p49 = scmp.eq.s32.totalorder %s16, 0
      %p50 = por %p48, %p49
      %p51 = scmp.ne.s32.totalorder %s40, %s43
      %p52 = scmp.eq.s32.totalorder %s21, 1
      %p53 = por %p51, %p52
      %p54 = scmp.ne.s32.totalorder %s43, %s44
      %p55 = scmp.eq.s32.totalorder %s21, 0
      %p56 = por %p54, %p55
      %p57 = scmp.ne.s32.totalorder %s43, %s44
      %p58 = scmp.eq.s32.totalorder %s22, 1
      %p59 = por %p57, %p58
      %p61 = scmp.ne.s32.totalorder %s44, %s60
      %p62 = scmp.eq.s32.totalorder %s22, 0
      %p63 = por %p61, %p62
      %s65 = sadd.s32 %s64, 1
      %p68 = scmp.eq.s32.totalorder %s16, 1
      %p69 = scmp.ne.s32.totalorder %s64, %s66
      %p70 = scmp.eq.s32.totalorder %s16, 0
      %p71 = por %p69, %p70
      %p72 = scmp.ne.s32.totalorder %s64, %s66
      %p73 = scmp.eq.s32.totalorder %s21, 1
      %p74 = por %p72, %p73
      %p75 = scmp.ne.s32.totalorder %s66, %s67
      %p76 = scmp.eq.s32.totalorder %s21, 0
      %p77 = por %p75, %p76
      %p78 = scmp.ne.s32.totalorder %s66, %s67
      %p79 = scmp.eq.s32.totalorder %s22, 1
      %p80 = por %p78, %p79
      %p82 = scmp.ne.s32.totalorder %s67, %s81
      %p83 = scmp.eq.s32.totalorder %s22, 0
      %p84 = por %p82, %p83
      %s86 = sadd.s32 %s85, 1
      %p89 = scmp.eq.s32.totalorder %s16, 1
      %p90 = scmp.ne.s32.totalorder %s85, %s87
      %p91 = scmp.eq.s32.totalorder %s16, 0
      %p92 = por %p90, %p91
      %p93 = scmp.ne.s32.totalorder %s85, %s87
      %p94 = scmp.eq.s32.totalorder %s21, 1
      %p95 = por %p93, %p94
      %p96 = scmp.ne.s32.totalorder %s87, %s88
      %p97 = scmp.eq.s32.totalorder %s21, 0
      %p98 = por %p96, %p97
      %p99 = scmp.ne.s32.totalorder %s87, %s88
      %p100 = scmp.eq.s32.totalorder %s22, 1
      %p101 = por %p99, %p100
      %p103 = scmp.ne.s32.totalorder %s88, %s102
      %p104 = scmp.eq.s32.totalorder %s22, 0
      %p105 = por %p103, %p104
      %s106 = ssub.s32 %s23, %s35
      %p107 = scmp.eq.s32.totalorder %s106, 0
      %s109 = sadd.s32 %s108, 1
      %s110 = scalar_select %p107, %s108, %s109
      %p113 = pneg %p107
      %p114 = scmp.eq.s32.totalorder %s16, 1
      %p115 = por %p113, %p114
      %p116 = scmp.ne.s32.totalorder %s108, %s111
      %p117 = scmp.eq.s32.totalorder %s16, 0
      %p118 = por %p116, %p117
      %p119 = scmp.ne.s32.totalorder %s108, %s111
      %p120 = scmp.eq.s32.totalorder %s21, 1
      %p121 = por %p119, %p120
      %p122 = scmp.ne.s32.totalorder %s111, %s112
      %p123 = scmp.eq.s32.totalorder %s21, 0
      %p124 = por %p122, %p123
      %p125 = scmp.ne.s32.totalorder %s111, %s112
      %p126 = scmp.eq.s32.totalorder %s22, 1
      %p127 = por %p125, %p126
      %p129 = scmp.ne.s32.totalorder %s112, %s128
      %p130 = scmp.eq.s32.totalorder %s22, 0
      %p131 = por %p129, %p130
      %p132 = scmp.le.s32.totalorder 1, %s16
      %p133 = scmp.lt.s32.totalorder %s16, 3
      %p134 = pnand %p132, %p133
      %p135 = pneg %p134
      // Predicated region
      $region9: #{tpu_custom_call.1} parent=5 // pred_check
        _
      $region10: #{tpu_custom_call.1} parent=5 // pred_check_branch
        %137 = sbr.rel (%p134) target = $region12
      $region11: #{tpu_custom_call.1} parent=5 // pred_region
        %s138 = ssub.s32 %s16, 1
        // Predicated region
        $region13: #{tpu_custom_call.1} parent=11 // pred_check
          %p139 = pneg %p77
        $region14: #{tpu_custom_call.1} parent=11 // pred_check_branch
          %141 = sbr.rel (%p139) target = $region16
        $region15: #{tpu_custom_call.1} parent=11 // pred_region
          %143 = vsyncadd [#allocation8], 0
          %s144 = sshll.u32 %s1, 4
          %s145 = int_to_ptr.hbm [resolvable:$true] %s144
          %s146 = sshll.u32 [#allocation7], 4
          %s147 = int_to_ptr.vmem [resolvable:$true] %s146
          %152 = dma.hbm_to_vmem [thread:$0]  %s145, 1024, %s147, [#allocation8], 128, 128, 8
        $region16: #{tpu_custom_call.1} parent=11 // pred_fallthru
          _
        // Predicated region
        $region17: #{tpu_custom_call.1} parent=11 // pred_check
          %p153 = pneg %p98
        $region18: #{tpu_custom_call.1} parent=11 // pred_check_branch
          %155 = sbr.rel (%p153) target = $region20
        $region19: #{tpu_custom_call.1} parent=11 // pred_region
          %157 = vsyncadd [#allocation8], 0
          %s158 = sshll.u32 %s2, 4
          %s159 = int_to_ptr.hbm [resolvable:$true] %s158
          %s160 = sshll.u32 [#allocation9], 4
          %s161 = int_to_ptr.vmem [resolvable:$true] %s160
          %166 = dma.hbm_to_vmem [thread:$0]  %s159, 1024, %s161, [#allocation8], 128, 128, 8
        $region20: #{tpu_custom_call.1} parent=11 // pred_fallthru
          _
      $region12: #{tpu_custom_call.1} parent=5 // pred_fallthru
        _
      %p167 = scmp.lt.s32.totalorder %s16, 2
      // Predicated region
      $region21: #{tpu_custom_call.1} parent=5 // pred_check
        %p168 = pneg %p167
      $region22: #{tpu_custom_call.1} parent=5 // pred_check_branch
        %170 = sbr.rel (%p168) target = $region24
      $region23: #{tpu_custom_call.1} parent=5 // pred_region
        // Predicated region
        $region25: #{tpu_custom_call.1} parent=23 // pred_check
          %p171 = pneg %p50
        $region26: #{tpu_custom_call.1} parent=23 // pred_check_branch
          %173 = sbr.rel (%p171) target = $region28
        $region27: #{tpu_custom_call.1} parent=23 // pred_region
          %s174 = sand.u32 %s40, 1
          %s175 = scalar_lea.sflag [#allocation5], %s174
          %s176 = sand.u32 %s40, 1
          %s177 = smul.addr %s176, 128
          %s178 = scalar_lea.vmem [#allocation4], %s177
          %s179 = smul.u32 2, %s24
          %181 = vsyncadd %s175, 0
          %s182 = smul.addr %s23, 16
          %s183 = sadd.s32 %s179, %s182
          %s184 = smul.addr %s183, 8
          %s185 = scalar_lea.hbm %s0, %s184
          %s186 = sshll.u32 %s185, 4
          %s187 = int_to_ptr.hbm [resolvable:$true] %s186
          %s188 = sshll.u32 %s178, 4
          %s189 = int_to_ptr.vmem [resolvable:$true] %s188
          %194 = dma.hbm_to_vmem [thread:$0]  %s187, 2048, %s189, %s175, 256, 256, 16
        $region28: #{tpu_custom_call.1} parent=23 // pred_fallthru
          _
      $region24: #{tpu_custom_call.1} parent=5 // pred_fallthru
        _
      %p195 = scmp.le.s32.totalorder 1, %s16
      %p196 = scmp.lt.s32.totalorder %s16, 3
      %p197 = pnand %p195, %p196
      %p198 = pneg %p197
      // Predicated region
      $region29: #{tpu_custom_call.1} parent=5 // pred_check
        _
      $region30: #{tpu_custom_call.1} parent=5 // pred_check_branch
        %200 = sbr.rel (%p197) target = $region32
      $region31: #{tpu_custom_call.1} parent=5 // pred_region
        %s201 = ssub.s32 %s16, 1
        %s202 = sand.u32 %s43, 1
        %s203 = scalar_lea.sflag [#allocation5], %s202
        %s204 = sand.u32 %s43, 1
        %s205 = smul.addr %s204, 128
        %s206 = scalar_lea.vmem [#allocation4], %s205
        // Predicated region
        $region33: #{tpu_custom_call.1} parent=31 // pred_check
          %p207 = pneg %p56
        $region34: #{tpu_custom_call.1} parent=31 // pred_check_branch
          %209 = sbr.rel (%p207) target = $region36
        $region35: #{tpu_custom_call.1} parent=31 // pred_region
          %211 = dma.done %s203, 2048
        $region36: #{tpu_custom_call.1} parent=31 // pred_fallthru
          _
        // Predicated region
        $region37: #{tpu_custom_call.1} parent=31 // pred_check
          %p212 = pneg %p77
        $region38: #{tpu_custom_call.1} parent=31 // pred_check_branch
          %214 = sbr.rel (%p212) target = $region40
        $region39: #{tpu_custom_call.1} parent=31 // pred_region
          %216 = dma.done [#allocation8], 1024
        $region40: #{tpu_custom_call.1} parent=31 // pred_fallthru
          _
        // Predicated region
        $region41: #{tpu_custom_call.1} parent=31 // pred_check
          %p217 = pneg %p98
        $region42: #{tpu_custom_call.1} parent=31 // pred_check_branch
          %219 = sbr.rel (%p217) target = $region44
        $region43: #{tpu_custom_call.1} parent=31 // pred_region
          %221 = dma.done [#allocation8], 1024
        $region44: #{tpu_custom_call.1} parent=31 // pred_fallthru
          _
        %s222 = sand.u32 %s43, 1
        %s223 = scalar_lea.sflag [#allocation5], %s222
        %s224 = sand.u32 %s43, 1
        %s225 = smul.addr %s224, 128
        %s226 = scalar_lea.vmem [#allocation4], %s225
        %p227 = pneg %p56
        %p228 = pneg %p53
        %p229 = pneg %p77
        %p230 = pneg %p74
        %p231 = pneg %p98
        %p232 = pneg %p95
        %p233 = pneg %p124
        %p234 = pneg %p121
        %s235 = sand.u32 %s111, 1
        %s236 = scalar_lea.sflag [#allocation6], %s235
        %s237 = sand.u32 %s111, 1
        %s238 = scalar_lea.vmem [#allocation10], %s237
        %s239 = smul.u32 2, %s26
        %p240 = scmp.eq.s32.totalorder %s26, 0
        // Predicated region
        $region45: #{tpu_custom_call.1} parent=31 // pred_check
          %p241 = pneg %p240
        $region46: #{tpu_custom_call.1} parent=31 // pred_check_branch
          %243 = sbr.rel (%p241) target = $region48
        $region47: #{tpu_custom_call.1} parent=31 // pred_region
          %vm244 = vcmask 516096
          %245 = vst.msk [vmem:[#allocation2] sm:$0x1] %vm244, 0.0
          %246 = vst.msk [vmem:[#allocation3] sm:$0x1] %vm244, -inf
        $region48: #{tpu_custom_call.1} parent=31 // pred_fallthru
          _
        %v247 = vld [vmem:[%s206] sm:$0xff]
        %v248 = vld [vmem:[%s206 + $0x8] sm:$0xff]
        %v249 = vld [vmem:[%s206 + $0x10] sm:$0xff]
        %v250 = vld [vmem:[%s206 + $0x18] sm:$0xff]
        %v251 = vld [vmem:[%s206 + $0x20] sm:$0xff]
        %v252 = vld [vmem:[%s206 + $0x28] sm:$0xff]
        %v253 = vld [vmem:[%s206 + $0x30] sm:$0xff]
        %v254 = vld [vmem:[%s206 + $0x38] sm:$0xff]
        %v255 = vld [vmem:[%s206 + $0x40] sm:$0xff]
        %v256 = vld [vmem:[%s206 + $0x48] sm:$0xff]
        %v257 = vld [vmem:[%s206 + $0x50] sm:$0xff]
        %v258 = vld [vmem:[%s206 + $0x58] sm:$0xff]
        %v259 = vld [vmem:[%s206 + $0x60] sm:$0xff]
        %v260 = vld [vmem:[%s206 + $0x68] sm:$0xff]
        %v261 = vld [vmem:[%s206 + $0x70] sm:$0xff]
        %v262 = vld [vmem:[%s206 + $0x78] sm:$0xff]
        %v263 = vld [vmem:[#allocation2] sm:$0x1]
        %v264 = vadd.f32 %v247, %v248
        %265 = vadd.xlane.f32.xlu0 %v264
        %v266 = vpop.xlane.xlu0 %265
        %v267 = vadd.f32 %v249, %v250
        %268 = vadd.xlane.f32.xlu0 %v267
        %v269 = vpop.xlane.xlu0 %268
        %v270 = vadd.f32 %v251, %v252
        %271 = vadd.xlane.f32.xlu0 %v270
        %v272 = vpop.xlane.xlu0 %271
        %v273 = vadd.f32 %v253, %v254
        %274 = vadd.xlane.f32.xlu0 %v273
        %v275 = vpop.xlane.xlu0 %274
        %v276 = vadd.f32 %v255, %v256
        %277 = vadd.xlane.f32.xlu0 %v276
        %v278 = vpop.xlane.xlu0 %277
        %v279 = vadd.f32 %v257, %v258
        %280 = vadd.xlane.f32.xlu0 %v279
        %v281 = vpop.xlane.xlu0 %280
        %v282 = vadd.f32 %v259, %v260
        %283 = vadd.xlane.f32.xlu0 %v282
        %v284 = vpop.xlane.xlu0 %283
        %v285 = vadd.f32 %v261, %v262
        %286 = vadd.xlane.f32.xlu0 %v285
        %v287 = vpop.xlane.xlu0 %286
        %v296 = vperm.slane %v266, 0
        %v297 = vperm.slane %v266, 1
        %v298 = vperm.slane %v266, 2
        %v299 = vperm.slane %v266, 3
        %v300 = vperm.slane %v266, 4
        %v301 = vperm.slane %v266, 5
        %v302 = vperm.slane %v266, 6
        %v303 = vperm.slane %v266, 7
        %v304 = vperm.slane %v269, 0
        %v305 = vperm.slane %v269, 1
        %v306 = vperm.slane %v269, 2
        %v307 = vperm.slane %v269, 3
        %v308 = vperm.slane %v269, 4
        %v309 = vperm.slane %v269, 5
        %v310 = vperm.slane %v269, 6
        %v311 = vperm.slane %v269, 7
        %v312 = vperm.slane %v272, 0
        %v313 = vperm.slane %v272, 1
        %v314 = vperm.slane %v272, 2
        %v315 = vperm.slane %v272, 3
        %v316 = vperm.slane %v272, 4
        %v317 = vperm.slane %v272, 5
        %v318 = vperm.slane %v272, 6
        %v319 = vperm.slane %v272, 7
        %v320 = vperm.slane %v275, 0
        %v321 = vperm.slane %v275, 1
        %v322 = vperm.slane %v275, 2
        %v323 = vperm.slane %v275, 3
        %v324 = vperm.slane %v275, 4
        %v325 = vperm.slane %v275, 5
        %v326 = vperm.slane %v275, 6
        %v327 = vperm.slane %v275, 7
        %v328 = vperm.slane %v278, 0
        %v329 = vperm.slane %v278, 1
        %v330 = vperm.slane %v278, 2
        %v331 = vperm.slane %v278, 3
        %v332 = vperm.slane %v278, 4
        %v333 = vperm.slane %v278, 5
        %v334 = vperm.slane %v278, 6
        %v335 = vperm.slane %v278, 7
        %v336 = vperm.slane %v281, 0
        %v337 = vperm.slane %v281, 1
        %v338 = vperm.slane %v281, 2
        %v339 = vperm.slane %v281, 3
        %v340 = vperm.slane %v281, 4
        %v341 = vperm.slane %v281, 5
        %v342 = vperm.slane %v281, 6
        %v343 = vperm.slane %v281, 7
        %v344 = vperm.slane %v284, 0
        %v345 = vperm.slane %v284, 1
        %v346 = vperm.slane %v284, 2
        %v347 = vperm.slane %v284, 3
        %v348 = vperm.slane %v284, 4
        %v349 = vperm.slane %v284, 5
        %v350 = vperm.slane %v284, 6
        %v351 = vperm.slane %v284, 7
        %v352 = vperm.slane %v287, 0
        %v353 = vperm.slane %v287, 1
        %v354 = vperm.slane %v287, 2
        %v355 = vperm.slane %v287, 3
        %v356 = vperm.slane %v287, 4
        %v357 = vperm.slane %v287, 5
        %v358 = vperm.slane %v287, 6
        %v359 = vperm.slane %v287, 7
        %360 = vst [vmem:[#allocation1] ss:$9 sm:$0xff] %v296
        %s361 = scalar_lea.vmem [#allocation1], 1
        %362 = vst [vmem:[%s361] ss:$9 sm:$0xff] %v297
        %s363 = scalar_lea.vmem [#allocation1], 2
        %364 = vst [vmem:[%s363] ss:$9 sm:$0xff] %v298
        %s365 = scalar_lea.vmem [#allocation1], 3
        %366 = vst [vmem:[%s365] ss:$9 sm:$0xff] %v299
        %s367 = scalar_lea.vmem [#allocation1], 4
        %368 = vst [vmem:[%s367] ss:$9 sm:$0xff] %v300
        %s369 = scalar_lea.vmem [#allocation1], 5
        %370 = vst [vmem:[%s369] ss:$9 sm:$0xff] %v301
        %s371 = scalar_lea.vmem [#allocation1], 6
        %372 = vst [vmem:[%s371] ss:$9 sm:$0xff] %v302
        %s373 = scalar_lea.vmem [#allocation1], 7
        %374 = vst [vmem:[%s373] ss:$9 sm:$0xff] %v303
        %v375 = vld [vmem:[#allocation1] sm:$0xff]
        %376 = vst [vmem:[#allocation1] ss:$9 sm:$0xff] %v304
        %377 = vst [vmem:[%s361] ss:$9 sm:$0xff] %v305
        %378 = vst [vmem:[%s363] ss:$9 sm:$0xff] %v306
        %379 = vst [vmem:[%s365] ss:$9 sm:$0xff] %v307
        %380 = vst [vmem:[%s367] ss:$9 sm:$0xff] %v308
        %381 = vst [vmem:[%s369] ss:$9 sm:$0xff] %v309
        %382 = vst [vmem:[%s371] ss:$9 sm:$0xff] %v310
        %383 = vst [vmem:[%s373] ss:$9 sm:$0xff] %v311
        %v384 = vld [vmem:[#allocation1] sm:$0xff]
        %385 = vst [vmem:[#allocation1] ss:$9 sm:$0xff] %v312
        %386 = vst [vmem:[%s361] ss:$9 sm:$0xff] %v313
        %387 = vst [vmem:[%s363] ss:$9 sm:$0xff] %v314
        %388 = vst [vmem:[%s365] ss:$9 sm:$0xff] %v315
        %389 = vst [vmem:[%s367] ss:$9 sm:$0xff] %v316
        %390 = vst [vmem:[%s369] ss:$9 sm:$0xff] %v317
        %391 = vst [vmem:[%s371] ss:$9 sm:$0xff] %v318
        %392 = vst [vmem:[%s373] ss:$9 sm:$0xff] %v319
        %v393 = vld [vmem:[#allocation1] sm:$0xff]
        %394 = vst [vmem:[#allocation1] ss:$9 sm:$0xff] %v320
        %395 = vst [vmem:[%s361] ss:$9 sm:$0xff] %v321
        %396 = vst [vmem:[%s363] ss:$9 sm:$0xff] %v322
        %397 = vst [vmem:[%s365] ss:$9 sm:$0xff] %v323
        %398 = vst [vmem:[%s367] ss:$9 sm:$0xff] %v324
        %399 = vst [vmem:[%s369] ss:$9 sm:$0xff] %v325
        %400 = vst [vmem:[%s371] ss:$9 sm:$0xff] %v326
        %401 = vst [vmem:[%s373] ss:$9 sm:$0xff] %v327
        %v402 = vld [vmem:[#allocation1] sm:$0xff]
        %403 = vst [vmem:[#allocation1] ss:$9 sm:$0xff] %v328
        %404 = vst [vmem:[%s361] ss:$9 sm:$0xff] %v329
        %405 = vst [vmem:[%s363] ss:$9 sm:$0xff] %v330
        %406 = vst [vmem:[%s365] ss:$9 sm:$0xff] %v331
        %407 = vst [vmem:[%s367] ss:$9 sm:$0xff] %v332
        %408 = vst [vmem:[%s369] ss:$9 sm:$0xff] %v333
        %409 = vst [vmem:[%s371] ss:$9 sm:$0xff] %v334
        %410 = vst [vmem:[%s373] ss:$9 sm:$0xff] %v335
        %v411 = vld [vmem:[#allocation1] sm:$0xff]
        %412 = vst [vmem:[#allocation1] ss:$9 sm:$0xff] %v336
        %413 = vst [vmem:[%s361] ss:$9 sm:$0xff] %v337
        %414 = vst [vmem:[%s363] ss:$9 sm:$0xff] %v338
        %415 = vst [vmem:[%s365] ss:$9 sm:$0xff] %v339
        %416 = vst [vmem:[%s367] ss:$9 sm:$0xff] %v340
        %417 = vst [vmem:[%s369] ss:$9 sm:$0xff] %v341
        %418 = vst [vmem:[%s371] ss:$9 sm:$0xff] %v342
        %419 = vst [vmem:[%s373] ss:$9 sm:$0xff] %v343
        %v420 = vld [vmem:[#allocation1] sm:$0xff]
        %421 = vst [vmem:[#allocation1] ss:$9 sm:$0xff] %v344
        %422 = vst [vmem:[%s361] ss:$9 sm:$0xff] %v345
        %423 = vst [vmem:[%s363] ss:$9 sm:$0xff] %v346
        %424 = vst [vmem:[%s365] ss:$9 sm:$0xff] %v347
        %425 = vst [vmem:[%s367] ss:$9 sm:$0xff] %v348
        %426 = vst [vmem:[%s369] ss:$9 sm:$0xff] %v349
        %427 = vst [vmem:[%s371] ss:$9 sm:$0xff] %v350
        %428 = vst [vmem:[%s373] ss:$9 sm:$0xff] %v351
        %v429 = vld [vmem:[#allocation1] sm:$0xff]
        %430 = vst [vmem:[#allocation1] ss:$9 sm:$0xff] %v352
        %431 = vst [vmem:[%s361] ss:$9 sm:$0xff] %v353
        %432 = vst [vmem:[%s363] ss:$9 sm:$0xff] %v354
        %433 = vst [vmem:[%s365] ss:$9 sm:$0xff] %v355
        %434 = vst [vmem:[%s367] ss:$9 sm:$0xff] %v356
        %435 = vst [vmem:[%s369] ss:$9 sm:$0xff] %v357
        %436 = vst [vmem:[%s371] ss:$9 sm:$0xff] %v358
        %437 = vst [vmem:[%s373] ss:$9 sm:$0xff] %v359
        %v438 = vld [vmem:[#allocation1] sm:$0xff]
        %439 = vset.pattern.permute.xlu0 0
        %440 = vperm.xlu0 %439, %v375
        %v441 = vpop.permute.xlu0 %440
        %442 = vset.pattern.permute.xlu0 0
        %443 = vperm.xlu0 %442, %v384
        %v444 = vpop.permute.xlu0 %443
        %445 = vset.pattern.permute.xlu0 0
        %446 = vperm.xlu0 %445, %v393
        %v447 = vpop.permute.xlu0 %446
        %448 = vset.pattern.permute.xlu0 0
        %449 = vperm.xlu0 %448, %v402
        %v450 = vpop.permute.xlu0 %449
        %451 = vset.pattern.permute.xlu0 0
        %452 = vperm.xlu0 %451, %v411
        %v453 = vpop.permute.xlu0 %452
        %454 = vset.pattern.permute.xlu0 0
        %455 = vperm.xlu0 %454, %v420
        %v456 = vpop.permute.xlu0 %455
        %457 = vset.pattern.permute.xlu0 0
        %458 = vperm.xlu0 %457, %v429
        %v459 = vpop.permute.xlu0 %458
        %460 = vset.pattern.permute.xlu0 0
        %461 = vperm.xlu0 %460, %v438
        %v462 = vpop.permute.xlu0 %461
        %v463 = vlaneseq
        %v464 = vand.u32 %v463, 127
        %v465 = vperm.slane %v441, %v464
        %v466 = vadd.s32 %v464, 4294967288
        %v467 = vperm.slane %v444, %v466
        %vm468 = vcmask 130112
        %v469 = vsel %vm468, %v467, %v465
        %v470 = vadd.s32 %v464, 4294967280
        %v471 = vperm.slane %v447, %v470
        %vm472 = vcmask 195712
        %v473 = vsel %vm472, %v471, %v469
        %v474 = vadd.s32 %v464, 4294967272
        %v475 = vperm.slane %v450, %v474
        %vm476 = vcmask 261312
        %v477 = vsel %vm476, %v475, %v473
        %v478 = vadd.s32 %v464, 4294967264
        %v479 = vperm.slane %v453, %v478
        %vm480 = vcmask 326912
        %v481 = vsel %vm480, %v479, %v477
        %v482 = vadd.s32 %v464, 4294967256
        %v483 = vperm.slane %v456, %v482
        %vm484 = vcmask 392512
        %v485 = vsel %vm484, %v483, %v481
        %v486 = vadd.s32 %v464, 4294967248
        %v487 = vperm.slane %v459, %v486
        %vm488 = vcmask 458112
        %v489 = vsel %vm488, %v487, %v485
        %v490 = vadd.s32 %v464, 4294967240
        %v491 = vperm.slane %v462, %v490
        %vm492 = vcmask 523712
        %v493 = vsel %vm492, %v491, %v489
        %v495 = vadd.f32 %v263, %v493
        %vm496 = vcmask 516096
        %497 = vst.msk [vmem:[#allocation2] sm:$0x1] %vm496, %v495
        %v498 = vld [vmem:[#allocation3] sm:$0x1]
        %v499 = vmax.f32 %v247, %v248
        %500 = vmax.xlane.f32.xlu0 %v499
        %v501 = vpop.xlane.xlu0 %500
        %v502 = vmax.f32 %v249, %v250
        %503 = vmax.xlane.f32.xlu0 %v502
        %v504 = vpop.xlane.xlu0 %503
        %v505 = vmax.f32 %v251, %v252
        %506 = vmax.xlane.f32.xlu0 %v505
        %v507 = vpop.xlane.xlu0 %506
        %v508 = vmax.f32 %v253, %v254
        %509 = vmax.xlane.f32.xlu0 %v508
        %v510 = vpop.xlane.xlu0 %509
        %v511 = vmax.f32 %v255, %v256
        %512 = vmax.xlane.f32.xlu0 %v511
        %v513 = vpop.xlane.xlu0 %512
        %v514 = vmax.f32 %v257, %v258
        %515 = vmax.xlane.f32.xlu0 %v514
        %v516 = vpop.xlane.xlu0 %515
        %v517 = vmax.f32 %v259, %v260
        %518 = vmax.xlane.f32.xlu0 %v517
        %v519 = vpop.xlane.xlu0 %518
        %v520 = vmax.f32 %v261, %v262
        %521 = vmax.xlane.f32.xlu0 %v520
        %v522 = vpop.xlane.xlu0 %521
        %v531 = vperm.slane %v501, 0
        %v532 = vperm.slane %v501, 1
        %v533 = vperm.slane %v501, 2
        %v534 = vperm.slane %v501, 3
        %v535 = vperm.slane %v501, 4
        %v536 = vperm.slane %v501, 5
        %v537 = vperm.slane %v501, 6
        %v538 = vperm.slane %v501, 7
        %v539 = vperm.slane %v504, 0
        %v540 = vperm.slane %v504, 1
        %v541 = vperm.slane %v504, 2
        %v542 = vperm.slane %v504, 3
        %v543 = vperm.slane %v504, 4
        %v544 = vperm.slane %v504, 5
        %v545 = vperm.slane %v504, 6
        %v546 = vperm.slane %v504, 7
        %v547 = vperm.slane %v507, 0
        %v548 = vperm.slane %v507, 1
        %v549 = vperm.slane %v507, 2
        %v550 = vperm.slane %v507, 3
        %v551 = vperm.slane %v507, 4
        %v552 = vperm.slane %v507, 5
        %v553 = vperm.slane %v507, 6
        %v554 = vperm.slane %v507, 7
        %v555 = vperm.slane %v510, 0
        %v556 = vperm.slane %v510, 1
        %v557 = vperm.slane %v510, 2
        %v558 = vperm.slane %v510, 3
        %v559 = vperm.slane %v510, 4
        %v560 = vperm.slane %v510, 5
        %v561 = vperm.slane %v510, 6
        %v562 = vperm.slane %v510, 7
        %v563 = vperm.slane %v513, 0
        %v564 = vperm.slane %v513, 1
        %v565 = vperm.slane %v513, 2
        %v566 = vperm.slane %v513, 3
        %v567 = vperm.slane %v513, 4
        %v568 = vperm.slane %v513, 5
        %v569 = vperm.slane %v513, 6
        %v570 = vperm.slane %v513, 7
        %v571 = vperm.slane %v516, 0
        %v572 = vperm.slane %v516, 1
        %v573 = vperm.slane %v516, 2
        %v574 = vperm.slane %v516, 3
        %v575 = vperm.slane %v516, 4
        %v576 = vperm.slane %v516, 5
        %v577 = vperm.slane %v516, 6
        %v578 = vperm.slane %v516, 7
        %v579 = vperm.slane %v519, 0
        %v580 = vperm.slane %v519, 1
        %v581 = vperm.slane %v519, 2
        %v582 = vperm.slane %v519, 3
        %v583 = vperm.slane %v519, 4
        %v584 = vperm.slane %v519, 5
        %v585 = vperm.slane %v519, 6
        %v586 = vperm.slane %v519, 7
        %v587 = vperm.slane %v522, 0
        %v588 = vperm.slane %v522, 1
        %v589 = vperm.slane %v522, 2
        %v590 = vperm.slane %v522, 3
        %v591 = vperm.slane %v522, 4
        %v592 = vperm.slane %v522, 5
        %v593 = vperm.slane %v522, 6
        %v594 = vperm.slane %v522, 7
        %595 = vst [vmem:[#allocation1] ss:$9 sm:$0xff] %v531
        %s596 = scalar_lea.vmem [#allocation1], 1
        %597 = vst [vmem:[%s596] ss:$9 sm:$0xff] %v532
        %s598 = scalar_lea.vmem [#allocation1], 2
        %599 = vst [vmem:[%s598] ss:$9 sm:$0xff] %v533
        %s600 = scalar_lea.vmem [#allocation1], 3
        %601 = vst [vmem:[%s600] ss:$9 sm:$0xff] %v534
        %s602 = scalar_lea.vmem [#allocation1], 4
        %603 = vst [vmem:[%s602] ss:$9 sm:$0xff] %v535
        %s604 = scalar_lea.vmem [#allocation1], 5
        %605 = vst [vmem:[%s604] ss:$9 sm:$0xff] %v536
        %s606 = scalar_lea.vmem [#allocation1], 6
        %607 = vst [vmem:[%s606] ss:$9 sm:$0xff] %v537
        %s608 = scalar_lea.vmem [#allocation1], 7
        %609 = vst [vmem:[%s608] ss:$9 sm:$0xff] %v538
        %v610 = vld [vmem:[#allocation1] sm:$0xff]
        %611 = vst [vmem:[#allocation1] ss:$9 sm:$0xff] %v539
        %612 = vst [vmem:[%s596] ss:$9 sm:$0xff] %v540
        %613 = vst [vmem:[%s598] ss:$9 sm:$0xff] %v541
        %614 = vst [vmem:[%s600] ss:$9 sm:$0xff] %v542
        %615 = vst [vmem:[%s602] ss:$9 sm:$0xff] %v543
        %616 = vst [vmem:[%s604] ss:$9 sm:$0xff] %v544
        %617 = vst [vmem:[%s606] ss:$9 sm:$0xff] %v545
        %618 = vst [vmem:[%s608] ss:$9 sm:$0xff] %v546
        %v619 = vld [vmem:[#allocation1] sm:$0xff]
        %620 = vst [vmem:[#allocation1] ss:$9 sm:$0xff] %v547
        %621 = vst [vmem:[%s596] ss:$9 sm:$0xff] %v548
        %622 = vst [vmem:[%s598] ss:$9 sm:$0xff] %v549
        %623 = vst [vmem:[%s600] ss:$9 sm:$0xff] %v550
        %624 = vst [vmem:[%s602] ss:$9 sm:$0xff] %v551
        %625 = vst [vmem:[%s604] ss:$9 sm:$0xff] %v552
        %626 = vst [vmem:[%s606] ss:$9 sm:$0xff] %v553
        %627 = vst [vmem:[%s608] ss:$9 sm:$0xff] %v554
        %v628 = vld [vmem:[#allocation1] sm:$0xff]
        %629 = vst [vmem:[#allocation1] ss:$9 sm:$0xff] %v555
        %630 = vst [vmem:[%s596] ss:$9 sm:$0xff] %v556
        %631 = vst [vmem:[%s598] ss:$9 sm:$0xff] %v557
        %632 = vst [vmem:[%s600] ss:$9 sm:$0xff] %v558
        %633 = vst [vmem:[%s602] ss:$9 sm:$0xff] %v559
        %634 = vst [vmem:[%s604] ss:$9 sm:$0xff] %v560
        %635 = vst [vmem:[%s606] ss:$9 sm:$0xff] %v561
        %636 = vst [vmem:[%s608] ss:$9 sm:$0xff] %v562
        %v637 = vld [vmem:[#allocation1] sm:$0xff]
        %638 = vst [vmem:[#allocation1] ss:$9 sm:$0xff] %v563
        %639 = vst [vmem:[%s596] ss:$9 sm:$0xff] %v564
        %640 = vst [vmem:[%s598] ss:$9 sm:$0xff] %v565
        %641 = vst [vmem:[%s600] ss:$9 sm:$0xff] %v566
        %642 = vst [vmem:[%s602] ss:$9 sm:$0xff] %v567
        %643 = vst [vmem:[%s604] ss:$9 sm:$0xff] %v568
        %644 = vst [vmem:[%s606] ss:$9 sm:$0xff] %v569
        %645 = vst [vmem:[%s608] ss:$9 sm:$0xff] %v570
        %v646 = vld [vmem:[#allocation1] sm:$0xff]
        %647 = vst [vmem:[#allocation1] ss:$9 sm:$0xff] %v571
        %648 = vst [vmem:[%s596] ss:$9 sm:$0xff] %v572
        %649 = vst [vmem:[%s598] ss:$9 sm:$0xff] %v573
        %650 = vst [vmem:[%s600] ss:$9 sm:$0xff] %v574
        %651 = vst [vmem:[%s602] ss:$9 sm:$0xff] %v575
        %652 = vst [vmem:[%s604] ss:$9 sm:$0xff] %v576
        %653 = vst [vmem:[%s606] ss:$9 sm:$0xff] %v577
        %654 = vst [vmem:[%s608] ss:$9 sm:$0xff] %v578
        %v655 = vld [vmem:[#allocation1] sm:$0xff]
        %656 = vst [vmem:[#allocation1] ss:$9 sm:$0xff] %v579
        %657 = vst [vmem:[%s596] ss:$9 sm:$0xff] %v580
        %658 = vst [vmem:[%s598] ss:$9 sm:$0xff] %v581
        %659 = vst [vmem:[%s600] ss:$9 sm:$0xff] %v582
        %660 = vst [vmem:[%s602] ss:$9 sm:$0xff] %v583
        %661 = vst [vmem:[%s604] ss:$9 sm:$0xff] %v584
        %662 = vst [vmem:[%s606] ss:$9 sm:$0xff] %v585
        %663 = vst [vmem:[%s608] ss:$9 sm:$0xff] %v586
        %v664 = vld [vmem:[#allocation1] sm:$0xff]
        %665 = vst [vmem:[#allocation1] ss:$9 sm:$0xff] %v587
        %666 = vst [vmem:[%s596] ss:$9 sm:$0xff] %v588
        %667 = vst [vmem:[%s598] ss:$9 sm:$0xff] %v589
        %668 = vst [vmem:[%s600] ss:$9 sm:$0xff] %v590
        %669 = vst [vmem:[%s602] ss:$9 sm:$0xff] %v591
        %670 = vst [vmem:[%s604] ss:$9 sm:$0xff] %v592
        %671 = vst [vmem:[%s606] ss:$9 sm:$0xff] %v593
        %672 = vst [vmem:[%s608] ss:$9 sm:$0xff] %v594
        %v673 = vld [vmem:[#allocation1] sm:$0xff]
        %674 = vset.pattern.permute.xlu0 0
        %675 = vperm.xlu0 %674, %v610
        %v676 = vpop.permute.xlu0 %675
        %677 = vset.pattern.permute.xlu0 0
        %678 = vperm.xlu0 %677, %v619
        %v679 = vpop.permute.xlu0 %678
        %680 = vset.pattern.permute.xlu0 0
        %681 = vperm.xlu0 %680, %v628
        %v682 = vpop.permute.xlu0 %681
        %683 = vset.pattern.permute.xlu0 0
        %684 = vperm.xlu0 %683, %v637
        %v685 = vpop.permute.xlu0 %684
        %686 = vset.pattern.permute.xlu0 0
        %687 = vperm.xlu0 %686, %v646
        %v688 = vpop.permute.xlu0 %687
        %689 = vset.pattern.permute.xlu0 0
        %690 = vperm.xlu0 %689, %v655
        %v691 = vpop.permute.xlu0 %690
        %692 = vset.pattern.permute.xlu0 0
        %693 = vperm.xlu0 %692, %v664
        %v694 = vpop.permute.xlu0 %693
        %695 = vset.pattern.permute.xlu0 0
        %696 = vperm.xlu0 %695, %v673
        %v697 = vpop.permute.xlu0 %696
        %v698 = vperm.slane %v676, %v464
        %v699 = vperm.slane %v679, %v466
        %v700 = vsel %vm468, %v699, %v698
        %v701 = vperm.slane %v682, %v470
        %v702 = vsel %vm472, %v701, %v700
        %v703 = vperm.slane %v685, %v474
        %v704 = vsel %vm476, %v703, %v702
        %v705 = vperm.slane %v688, %v478
        %v706 = vsel %vm480, %v705, %v704
        %v707 = vperm.slane %v691, %v482
        %v708 = vsel %vm484, %v707, %v706
        %v709 = vperm.slane %v694, %v486
        %v710 = vsel %vm488, %v709, %v708
        %v711 = vperm.slane %v697, %v490
        %v712 = vsel %vm492, %v711, %v710
        %v714 = vmax.f32 %v498, %v712
        %715 = vst.msk [vmem:[#allocation3] sm:$0x1] %vm496, %v714
        // Predicated region
        $region49: #{tpu_custom_call.1} parent=31 // pred_check
          %p716 = pneg %p240
        $region50: #{tpu_custom_call.1} parent=31 // pred_check_branch
          %718 = sbr.rel (%p716) target = $region52
        $region51: #{tpu_custom_call.1} parent=31 // pred_region
          %v719 = vld [vmem:[#allocation2] sm:$0x1]
          %v720 = vmul.f32 %v719, 0.00390625
          %v721 = vld [vmem:[#allocation3] sm:$0x1]
          %v723 = vperm.slane %v721, 0
          %vm725 = vcmask 1040384
          %v726 = vsel %vm725, %v720, %v723
          %v727 = vld [vmem:[#allocation7] sm:$0xff]
          %v728 = vld [vmem:[#allocation7 + $0x8] sm:$0xff]
          %v729 = vld [vmem:[#allocation7 + $0x10] sm:$0xff]
          %v730 = vld [vmem:[#allocation7 + $0x18] sm:$0xff]
          %v731 = vld [vmem:[#allocation7 + $0x20] sm:$0xff]
          %v732 = vld [vmem:[#allocation7 + $0x28] sm:$0xff]
          %v733 = vld [vmem:[#allocation7 + $0x30] sm:$0xff]
          %v734 = vld [vmem:[#allocation7 + $0x38] sm:$0xff]
          %v735 = vld [vmem:[#allocation9] sm:$0xff]
          %v736 = vld [vmem:[#allocation9 + $0x8] sm:$0xff]
          %v737 = vld [vmem:[#allocation9 + $0x10] sm:$0xff]
          %v738 = vld [vmem:[#allocation9 + $0x18] sm:$0xff]
          %v739 = vld [vmem:[#allocation9 + $0x20] sm:$0xff]
          %v740 = vld [vmem:[#allocation9 + $0x28] sm:$0xff]
          %v741 = vld [vmem:[#allocation9 + $0x30] sm:$0xff]
          %v742 = vld [vmem:[#allocation9 + $0x38] sm:$0xff]
          %vm743 = vcmask 523264
          %v745 = vsel %vm743, %v726, 0
          %747 = vmatpush.msra.mxu0 0.0
          %748 = vmatpush.msra.mxu0 0.0
          %749 = vmatpush.msra.mxu0 0.0
          %750 = vmatpush.msra.mxu0 0.0
          %751 = vmatpush.msra.mxu0 0.0
          %752 = vmatpush.msra.mxu0 0.0
          %753 = vmatpush.msra.mxu0 0.0
          %754 = vmatpush.msra.mxu0 0.0
          %755 = vmatpush.msra.mxu0 %v734
          %756 = vmatpush.msra.mxu0 %v733
          %757 = vmatpush.msra.mxu0 %v732
          %758 = vmatpush.msra.mxu0 %v731
          %759 = vmatpush.msra.mxu0 %v730
          %760 = vmatpush.msra.mxu0 %v729
          %761 = vmatpush.msra.mxu0 %v728
          %762 = vmatpush.msra.mxu0 %v727
          %763 = vmatmul.f32.gmra.mxu0 %v745
          %v764 = vpop.f32.mrf.mxu0
          %v765 = vadd.f32 0.0, %v764
          %766 = vdwg.mxu0
          %v767 = vmax.f32 %v765, 0.0
          %v769 = vsel %vm743, %v767, 0
          %771 = vmatpush.msra.mxu0 0.0
          %772 = vmatpush.msra.mxu0 0.0
          %773 = vmatpush.msra.mxu0 0.0
          %774 = vmatpush.msra.mxu0 0.0
          %775 = vmatpush.msra.mxu0 0.0
          %776 = vmatpush.msra.mxu0 0.0
          %777 = vmatpush.msra.mxu0 0.0
          %778 = vmatpush.msra.mxu0 0.0
          %779 = vmatpush.msra.mxu0 %v742
          %780 = vmatpush.msra.mxu0 %v741
          %781 = vmatpush.msra.mxu0 %v740
          %782 = vmatpush.msra.mxu0 %v739
          %783 = vmatpush.msra.mxu0 %v738
          %784 = vmatpush.msra.mxu0 %v737
          %785 = vmatpush.msra.mxu0 %v736
          %786 = vmatpush.msra.mxu0 %v735
          %787 = vmatmul.f32.gmra.mxu0 %v769
          %v788 = vpop.f32.mrf.mxu0
          %v789 = vadd.f32 0.0, %v788
          %790 = vdwg.mxu0
          %v792 = vrot.slane %v789, 1
          %v794 = vadd.f32 %v789, %v792
          %v795 = vxor.u32 %v794, 2147483648
          %v796 = vmul.f32 %v795, 1.442695
          %v797 = vpow.pop %v796
          %v798 = vadd.f32 %v797, 1.0
          %v799 = vrcp.pop %v798
          %v800 = vmul.f32 %v798, %v799
          %v801 = vsub.f32 1.0, %v800
          %v802 = vmul.f32 %v799, %v801
          %v803 = vadd.f32 %v799, %v802
          %vm804 = vweird.f32 %v798
          %vm805 = vweird.f32 %v799
          %vm806 = vmor %vm804, %vm805
          %v807 = vsel %vm806, %v799, %v803
          %v808 = vand.u32 2147483647, %v798
          %vm809 = vcmp.eq.f32.partialorder %v808, 8.507059e+37
          %v810 = vand.u32 %v798, 2147483648
          %v811 = vor.u32 1.1754944e-38, %v810
          %v812 = vsel %vm809, %v811, %v807
          %v813 = vmul.f32 1.0, %v812
          %814 = vst.msk [vmem:[%s238] sm:$0x1] %vm496, %v813
        $region52: #{tpu_custom_call.1} parent=31 // pred_fallthru
          _
        %s815 = sand.u32 %s111, 1
        %s816 = scalar_lea.sflag [#allocation6], %s815
        %s817 = sand.u32 %s111, 1
        %s818 = scalar_lea.vmem [#allocation10], %s817
        // Predicated region
        $region53: #{tpu_custom_call.1} parent=31 // pred_check
          %p819 = pneg %p121
        $region54: #{tpu_custom_call.1} parent=31 // pred_check_branch
          %821 = sbr.rel (%p819) target = $region56
        $region55: #{tpu_custom_call.1} parent=31 // pred_region
          %823 = vsyncadd %s816, 0
          %s824 = scalar_lea.hbm %s3, %s25
          %s826 = sshll.u32 %s818, 4
          %s827 = int_to_ptr.vmem [resolvable:$true] %s826
          %s828 = sshll.u32 %s824, 4
          %s829 = int_to_ptr.hbm [resolvable:$true] %s828
          %831 = dma.vmem_to_hbm [thread:$0]  %s827, 16, %s829, %s816
        $region56: #{tpu_custom_call.1} parent=31 // pred_fallthru
          _
      $region32: #{tpu_custom_call.1} parent=5 // pred_fallthru
        _
      %p832 = scmp.le.s32.totalorder 2, %s16
      // Predicated region
      $region57: #{tpu_custom_call.1} parent=5 // pred_check
        %p833 = pneg %p832
      $region58: #{tpu_custom_call.1} parent=5 // pred_check_branch
        %835 = sbr.rel (%p833) target = $region60
      $region59: #{tpu_custom_call.1} parent=5 // pred_region
        %s836 = ssub.s32 %s16, 2
        // Predicated region
        $region61: #{tpu_custom_call.1} parent=59 // pred_check
          %p837 = pneg %p127
        $region62: #{tpu_custom_call.1} parent=59 // pred_check_branch
          %839 = sbr.rel (%p837) target = $region64
        $region63: #{tpu_custom_call.1} parent=59 // pred_region
          %s840 = sand.u32 %s112, 1
          %s841 = scalar_lea.sflag [#allocation6], %s840
          %s842 = sand.u32 %s112, 1
          %s843 = scalar_lea.vmem [#allocation10], %s842
          %845 = dma.done %s841, 16
        $region64: #{tpu_custom_call.1} parent=59 // pred_fallthru
          _
      $region60: #{tpu_custom_call.1} parent=5 // pred_fallthru
        _
    $region6: #{tpu_custom_call.1} parent=1 // loop_footer
      %s20 = sadd.s32 1, %s16
    $region7: #{tpu_custom_call.1} parent=1 // loop_footer_branch
      %15 = sbr.rel target = $region3
    $region8: #{tpu_custom_call.1} parent=1 // loop_exit
      _
    %846 = vsyncpa [#allocation5], 1
    %s847 = scalar_lea.sflag [#allocation5], 1
    %848 = vsyncpa %s847, 1
    %849 = vsyncpa [#allocation8], 1
    %850 = vsyncpa [#allocation6], 1
    %s851 = scalar_lea.sflag [#allocation6], 1
    %852 = vsyncpa %s851, 1

</llo_original>
